<compile_context>
chip_gen: v5e
topology: v5e:2x2
jax: 0.10.0
libtpu: 0.0.40
codegen_flags: <defaults>
</compile_context>

<pallas_src>
import functools

import jax
import jax.numpy as jnp
from jax.experimental import pallas as pl
from jax.experimental.pallas import tpu as pltpu

LANE = 128
SUBLANE = 8


def _round_up(n, m):
    return ((n + m - 1) // m) * m


def _mlp_kernel(alphas_ref, x_ref, w1_ref, b1_ref, w2_ref, b2_ref,
                w3_ref, b3_ref, o_ref):
    a1 = alphas_ref[0]
    a2 = alphas_ref[1]

    # Layer 1: Linear (bf16 operands, f32 accumulate) + PReLU
    h = jnp.dot(x_ref[...], w1_ref[...],
                preferred_element_type=jnp.float32) + b1_ref[...]
    h = jnp.where(h > 0, h, a1 * h)

    # Layer 2: Linear + PReLU
    h = jnp.dot(h.astype(w2_ref.dtype), w2_ref[...],
                preferred_element_type=jnp.float32) + b2_ref[...]
    h = jnp.where(h > 0, h, a2 * h)

    # Layer 3: Linear (output)
    o_ref[...] = (jnp.dot(h.astype(w3_ref.dtype), w3_ref[...],
                          preferred_element_type=jnp.float32)
                  + b3_ref[...]).astype(o_ref.dtype)


def _pad2(a, rows, cols, dtype):
    a = a.astype(dtype)
    return jnp.pad(a, ((0, rows - a.shape[0]), (0, cols - a.shape[1])))


@functools.partial(jax.jit, static_argnames=("tile_b",))
def adv_celebset_thgr_forward(x, params, *, tile_b=256):
    """x: (B, ndim) float32. params: dict of f32 weights/biases/prelu alphas."""
    B, ndim = x.shape
    hdl = params["w1"].shape[1]
    nout = params["w3"].shape[1]

    # Lane-dense padded feature dims, sublane-aligned batch tile.
    ndim_p = _round_up(ndim, LANE)
    hdl_p = _round_up(hdl, LANE)
    nout_p = _round_up(nout, LANE)
    tile_b = min(tile_b, _round_up(B, SUBLANE))
    b_p = _round_up(B, tile_b)

    # Pad + cast operands. bf16 for MXU operands, f32 for biases/alphas.
    x_p = _pad2(x, b_p, ndim_p, jnp.bfloat16)
    w1 = _pad2(params["w1"], ndim_p, hdl_p, jnp.bfloat16)
    b1 = _pad2(params["b1"], 1, hdl_p, jnp.float32)
    w2 = _pad2(params["w2"], hdl_p, hdl_p, jnp.bfloat16)
    b2 = _pad2(params["b2"], 1, hdl_p, jnp.float32)
    w3 = _pad2(params["w3"], hdl_p, nout_p, jnp.bfloat16)
    b3 = _pad2(params["b3"], 1, nout_p, jnp.float32)
    alphas = jnp.concatenate(
        [params["a1"].reshape(-1), params["a2"].reshape(-1)]).astype(jnp.float32)

    grid = (b_p // tile_b,)

    flops = 2 * b_p * (ndim_p * hdl_p + hdl_p * hdl_p + hdl_p * nout_p)
    bytes_accessed = (x_p.size * 2 + w1.size * 2 + w2.size * 2 + w3.size * 2
                      + (b1.size + b2.size + b3.size) * 4
                      + b_p * nout_p * 4)

    out = pl.pallas_call(
        _mlp_kernel,
        out_shape=jax.ShapeDtypeStruct((b_p, nout_p), jnp.float32),
        grid=grid,
        in_specs=[
            # PReLU alphas: scalars via SMEM (no padded VMEM tiles / DMAs).
            pl.BlockSpec(memory_space=pltpu.MemorySpace.SMEM),
            # Activations: tiled over batch.
            pl.BlockSpec((tile_b, ndim_p), lambda i: (i, 0)),
            # Weights / biases: resident across all grid steps.
            pl.BlockSpec((ndim_p, hdl_p), lambda i: (0, 0)),
            pl.BlockSpec((1, hdl_p), lambda i: (0, 0)),
            pl.BlockSpec((hdl_p, hdl_p), lambda i: (0, 0)),
            pl.BlockSpec((1, hdl_p), lambda i: (0, 0)),
            pl.BlockSpec((hdl_p, nout_p), lambda i: (0, 0)),
            pl.BlockSpec((1, nout_p), lambda i: (0, 0)),
        ],
        out_specs=pl.BlockSpec((tile_b, nout_p), lambda i: (i, 0)),
        compiler_params=pltpu.CompilerParams(
            dimension_semantics=("parallel",)),
        cost_estimate=pl.CostEstimate(
            flops=flops, transcendentals=0, bytes_accessed=bytes_accessed),
    )(alphas, x_p, w1, b1, w2, b2, w3, b3)

    # Slice away batch / output-lane padding.
    return out[:B, :nout]


def init_params(key, ndim, hdl, nout):
    """Deterministic synthetic init (shapes match nn.Linear / nn.PReLU)."""
    k1, k2, k3, k4, k5, k6 = jax.random.split(key, 6)
    scale1 = 1.0 / jnp.sqrt(ndim)
    scale2 = 1.0 / jnp.sqrt(hdl)
    return {
        # weights stored as (in, out) == PyTorch weight.T
        "w1": jax.random.uniform(k1, (ndim, hdl), jnp.float32, -scale1, scale1),
        "b1": jax.random.uniform(k2, (1, hdl), jnp.float32, -scale1, scale1),
        "a1": jnp.full((1, 1), 0.25, jnp.float32),  # nn.PReLU default init
        "w2": jax.random.uniform(k3, (hdl, hdl), jnp.float32, -scale2, scale2),
        "b2": jax.random.uniform(k4, (1, hdl), jnp.float32, -scale2, scale2),
        "a2": jnp.full((1, 1), 0.25, jnp.float32),
        "w3": jax.random.uniform(k5, (hdl, nout), jnp.float32, -scale2, scale2),
        "b3": jax.random.uniform(k6, (1, nout), jnp.float32, -scale2, scale2),
    }


def reference_forward(x, p):
    """Pure-JAX reference with the same bf16-operand / f32-accumulate scheme."""
    bf = jnp.bfloat16

    def prelu(h, a):
        return jnp.where(h > 0, h, a * h)

    h = jnp.dot(x.astype(bf), p["w1"].astype(bf),
                preferred_element_type=jnp.float32) + p["b1"]
    h = prelu(h, p["a1"][0, 0])
    h = jnp.dot(h.astype(bf), p["w2"].astype(bf),
                preferred_element_type=jnp.float32) + p["b2"]
    h = prelu(h, p["a2"][0, 0])
    return jnp.dot(h.astype(bf), p["w3"].astype(bf),
                   preferred_element_type=jnp.float32) + p["b3"]


if __name__ == "__main__":
    # Small shapes consistent with the module's forward: x is (batch, ndim).
    batch, ndim, hdl, nout = 8, 32, 32, 8

    key = jax.random.PRNGKey(0)
    kx, kp = jax.random.split(key)
    x = jax.random.normal(kx, (batch, ndim), jnp.float32)
    params = init_params(kp, ndim, hdl, nout)

    out = adv_celebset_thgr_forward(x, params)
    out = jax.block_until_ready(out)

    ref = reference_forward(x, params)
    assert out.shape == (batch, nout)
    assert jnp.allclose(out, ref, atol=2e-2, rtol=2e-2), "mismatch vs reference"

    print("KERNEL_OK")
</pallas_src>

<mosaic_0001>
module attributes {stable_mosaic.version = 11 : i64} {
  func.func @_mlp_kernel(%arg0: i32, %arg1: memref<2xf32, #tpu.memory_space<smem>>, %arg2: memref<8x128xbf16, #tpu.memory_space<vmem>>, %arg3: memref<128x128xbf16, #tpu.memory_space<vmem>>, %arg4: memref<1x128xf32, #tpu.memory_space<vmem>>, %arg5: memref<128x128xbf16, #tpu.memory_space<vmem>>, %arg6: memref<1x128xf32, #tpu.memory_space<vmem>>, %arg7: memref<128x128xbf16, #tpu.memory_space<vmem>>, %arg8: memref<1x128xf32, #tpu.memory_space<vmem>>, %arg9: memref<8x128xf32, #tpu.memory_space<vmem>>) attributes {dimension_semantics = [#tpu.dimension_semantics<parallel>], iteration_bounds = array<i64: 1>, scalar_prefetch = 0 : i64, scratch_operands = 0 : i64, tpu.core_type = #tpu.core_type<tc>, window_params = [{transform_indices = @transform_0, window_bounds = array<i64: 2>}, {transform_indices = @transform_1, window_bounds = array<i64: 8, 128>}, {pipeline_mode = #tpu.pipeline_mode<synchronous>, transform_indices = @transform_2, window_bounds = array<i64: 128, 128>}, {pipeline_mode = #tpu.pipeline_mode<synchronous>, transform_indices = @transform_3, window_bounds = array<i64: 1, 128>}, {pipeline_mode = #tpu.pipeline_mode<synchronous>, transform_indices = @transform_4, window_bounds = array<i64: 128, 128>}, {pipeline_mode = #tpu.pipeline_mode<synchronous>, transform_indices = @transform_5, window_bounds = array<i64: 1, 128>}, {pipeline_mode = #tpu.pipeline_mode<synchronous>, transform_indices = @transform_6, window_bounds = array<i64: 128, 128>}, {pipeline_mode = #tpu.pipeline_mode<synchronous>, transform_indices = @transform_7, window_bounds = array<i64: 1, 128>}, {transform_indices = @transform_8, window_bounds = array<i64: 8, 128>}]} {
    %c0 = arith.constant 0 : index
    %0 = memref.load %arg1[%c0] : memref<2xf32, #tpu.memory_space<smem>>
    %c1 = arith.constant 1 : index
    %1 = memref.load %arg1[%c1] : memref<2xf32, #tpu.memory_space<smem>>
    %c0_0 = arith.constant 0 : index
    %c0_1 = arith.constant 0 : index
    %2 = vector.load %arg2[%c0_0, %c0_1] : memref<8x128xbf16, #tpu.memory_space<vmem>>, vector<8x128xbf16>
    %c0_2 = arith.constant 0 : index
    %c0_3 = arith.constant 0 : index
    %3 = vector.load %arg3[%c0_2, %c0_3] : memref<128x128xbf16, #tpu.memory_space<vmem>>, vector<128x128xbf16>
    %cst = arith.constant dense<0.000000e+00> : vector<8x128xf32>
    %4 = tpu.matmul %2, %3, %cst {dimension_numbers = #tpu.dot_dimension_numbers<[1], [0], [0], [1], [0, 0, 1, 1], [], []>} : vector<8x128xbf16>, vector<128x128xbf16>, vector<8x128xf32> -> vector<8x128xf32>
    %c0_4 = arith.constant 0 : index
    %c0_5 = arith.constant 0 : index
    %5 = vector.load %arg4[%c0_4, %c0_5] : memref<1x128xf32, #tpu.memory_space<vmem>>, vector<1x128xf32>
    %6 = vector.broadcast %5 : vector<1x128xf32> to vector<8x128xf32>
    %7 = arith.addf %4, %6 : vector<8x128xf32>
    %cst_6 = arith.constant 0.000000e+00 : f32
    %8 = vector.broadcast %cst_6 : f32 to vector<8x128xf32>
    %9 = arith.cmpf ogt, %7, %8 : vector<8x128xf32>
    %10 = vector.broadcast %0 : f32 to vector<8x128xf32>
    %11 = arith.mulf %10, %7 : vector<8x128xf32>
    %12 = arith.select %9, %7, %11 : vector<8x128xi1>, vector<8x128xf32>
    %13 = arith.truncf %12 : vector<8x128xf32> to vector<8x128xbf16>
    %c0_7 = arith.constant 0 : index
    %c0_8 = arith.constant 0 : index
    %14 = vector.load %arg5[%c0_7, %c0_8] : memref<128x128xbf16, #tpu.memory_space<vmem>>, vector<128x128xbf16>
    %cst_9 = arith.constant dense<0.000000e+00> : vector<8x128xf32>
    %15 = tpu.matmul %13, %14, %cst_9 {dimension_numbers = #tpu.dot_dimension_numbers<[1], [0], [0], [1], [0, 0, 1, 1], [], []>} : vector<8x128xbf16>, vector<128x128xbf16>, vector<8x128xf32> -> vector<8x128xf32>
    %c0_10 = arith.constant 0 : index
    %c0_11 = arith.constant 0 : index
    %16 = vector.load %arg6[%c0_10, %c0_11] : memref<1x128xf32, #tpu.memory_space<vmem>>, vector<1x128xf32>
    %17 = vector.broadcast %16 : vector<1x128xf32> to vector<8x128xf32>
    %18 = arith.addf %15, %17 : vector<8x128xf32>
    %cst_12 = arith.constant 0.000000e+00 : f32
    %19 = vector.broadcast %cst_12 : f32 to vector<8x128xf32>
    %20 = arith.cmpf ogt, %18, %19 : vector<8x128xf32>
    %21 = vector.broadcast %1 : f32 to vector<8x128xf32>
    %22 = arith.mulf %21, %18 : vector<8x128xf32>
    %23 = arith.select %20, %18, %22 : vector<8x128xi1>, vector<8x128xf32>
    %24 = arith.truncf %23 : vector<8x128xf32> to vector<8x128xbf16>
    %c0_13 = arith.constant 0 : index
    %c0_14 = arith.constant 0 : index
    %25 = vector.load %arg7[%c0_13, %c0_14] : memref<128x128xbf16, #tpu.memory_space<vmem>>, vector<128x128xbf16>
    %cst_15 = arith.constant dense<0.000000e+00> : vector<8x128xf32>
    %26 = tpu.matmul %24, %25, %cst_15 {dimension_numbers = #tpu.dot_dimension_numbers<[1], [0], [0], [1], [0, 0, 1, 1], [], []>} : vector<8x128xbf16>, vector<128x128xbf16>, vector<8x128xf32> -> vector<8x128xf32>
    %c0_16 = arith.constant 0 : index
    %c0_17 = arith.constant 0 : index
    %27 = vector.load %arg8[%c0_16, %c0_17] : memref<1x128xf32, #tpu.memory_space<vmem>>, vector<1x128xf32>
    %28 = vector.broadcast %27 : vector<1x128xf32> to vector<8x128xf32>
    %29 = arith.addf %26, %28 : vector<8x128xf32>
    %c0_18 = arith.constant 0 : index
    %c0_19 = arith.constant 0 : index
    %30 = vector.load %arg9[%c0_18, %c0_19] : memref<8x128xf32, #tpu.memory_space<vmem>>, vector<8x128xf32>
    tpu.vector_store %arg9[%c0_18, %c0_19], %29 {strides = array<i32>} : memref<8x128xf32, #tpu.memory_space<vmem>>, vector<8x128xf32>,
    return
  }
  func.func @transform_0(%arg0: i32) -> i32 {
    %c0_i32 = arith.constant 0 : i32
    %c0_i32_0 = arith.constant 0 : i32
    return %c0_i32 : i32
  }
  func.func @transform_1(%arg0: i32) -> (i32, i32) {
    %c0_i32 = arith.constant 0 : i32
    %c0_i32_0 = arith.constant 0 : i32
    return %arg0, %c0_i32 : i32, i32
  }
  func.func @transform_2(%arg0: i32) -> (i32, i32) {
    %c0_i32 = arith.constant 0 : i32
    %c0_i32_0 = arith.constant 0 : i32
    %c0_i32_1 = arith.constant 0 : i32
    return %c0_i32, %c0_i32_0 : i32, i32
  }
  func.func @transform_3(%arg0: i32) -> (i32, i32) {
    %c0_i32 = arith.constant 0 : i32
    %c0_i32_0 = arith.constant 0 : i32
    %c0_i32_1 = arith.constant 0 : i32
    return %c0_i32, %c0_i32_0 : i32, i32
  }
  func.func @transform_4(%arg0: i32) -> (i32, i32) {
    %c0_i32 = arith.constant 0 : i32
    %c0_i32_0 = arith.constant 0 : i32
    %c0_i32_1 = arith.constant 0 : i32
    return %c0_i32, %c0_i32_0 : i32, i32
  }
  func.func @transform_5(%arg0: i32) -> (i32, i32) {
    %c0_i32 = arith.constant 0 : i32
    %c0_i32_0 = arith.constant 0 : i32
    %c0_i32_1 = arith.constant 0 : i32
    return %c0_i32, %c0_i32_0 : i32, i32
  }
  func.func @transform_6(%arg0: i32) -> (i32, i32) {
    %c0_i32 = arith.constant 0 : i32
    %c0_i32_0 = arith.constant 0 : i32
    %c0_i32_1 = arith.constant 0 : i32
    return %c0_i32, %c0_i32_0 : i32, i32
  }
  func.func @transform_7(%arg0: i32) -> (i32, i32) {
    %c0_i32 = arith.constant 0 : i32
    %c0_i32_0 = arith.constant 0 : i32
    %c0_i32_1 = arith.constant 0 : i32
    return %c0_i32, %c0_i32_0 : i32, i32
  }
  func.func @transform_8(%arg0: i32) -> (i32, i32) {
    %c0_i32 = arith.constant 0 : i32
    %c0_i32_0 = arith.constant 0 : i32
    return %arg0, %c0_i32 : i32, i32
  }
}

</mosaic_0001>

<llo_original>
// kernel: adv_celebset_thgr_forward.1
$region0: #{adv_celebset_thgr_forward.1}
  #allocation0 [shape = 'u32[]', space=smem, size = 0x4, offset = 0x4, fixed_abs, tag = 'smem constant byte address 0x4 - core index']
  #allocation1 [shape = 'u32[72,128]{1,0:T(1,128)}', space=vmem, size = 0x9000, scoped, tag = 'internal scratch']
  %s0 = inlined_call_operand.vmem [shape: f32[2], index: 0, kind: input, shape index: {}]
  %s1 = inlined_call_operand.vmem [shape: bf16[8,128], index: 1, kind: input, shape index: {}]
  %s2 = inlined_call_operand.vmem [shape: bf16[128,128], index: 2, kind: input, shape index: {}]
  %s3 = inlined_call_operand.vmem [shape: f32[1,128], index: 3, kind: input, shape index: {}]
  %s4 = inlined_call_operand.vmem [shape: bf16[128,128], index: 4, kind: input, shape index: {}]
  %s5 = inlined_call_operand.vmem [shape: f32[1,128], index: 5, kind: input, shape index: {}]
  %s6 = inlined_call_operand.vmem [shape: bf16[128,128], index: 6, kind: input, shape index: {}]
  %s7 = inlined_call_operand.vmem [shape: f32[1,128], index: 7, kind: input, shape index: {}]
  %s8 = inlined_call_operand.hbm [shape: f32[8,128], index: 8, kind: output, shape index: {}]
  %s9 = sld [smem:[#allocation0]]
  $region46: #{adv_celebset_thgr_forward.1} parent=0
    _
  %s11 = ssub.s32 1, %s9
  %s12 = scalar_select 0, %s11, %s9
  $region1: #{adv_celebset_thgr_forward.1} parent=0
    #allocation2 [shape = 'u8[512]{0}', space=smem, size = 0x200, scoped, tag = 'input window, operand 0, single buffered']
    #allocation3 [shape = 's32[1]{0}', space=sflag, size = 0x4, scoped, tag = 'scoped memory for adv_celebset_thgr_forward.1']
    #allocation4 [shape = 's32[1]{0}', space=sflag, size = 0x4, scoped, tag = 'scoped memory for adv_celebset_thgr_forward.1']
    #allocation5 [shape = 'u8[4096]{0}', space=vmem, size = 0x1000, scoped, tag = 'output window, operand 0, single buffered']
    %13 = vsyncpa [#allocation4], 0
    %14 = vsyncpa [#allocation3], 0
    // Predicated region
    $region2: #{adv_celebset_thgr_forward.1} parent=1 // pred_check
      _
    $region3: #{adv_celebset_thgr_forward.1} parent=1 // pred_check_branch
      %16 = sbr.rel (0) target = $region5
    $region4: #{adv_celebset_thgr_forward.1} parent=1 // pred_region
      %18 = vsyncadd [#allocation4], 0
      %s20 = sshll.u32 %s0, 4
      %s21 = int_to_ptr.vmem [resolvable:$true] %s20
      %23 = dma.vmem_to_smem %s21, 16, [#allocation2], [#allocation4]
    $region5: #{adv_celebset_thgr_forward.1} parent=1 // pred_fallthru
      _
    // Predicated region
    $region6: #{adv_celebset_thgr_forward.1} parent=1 // pred_check
      _
    $region7: #{adv_celebset_thgr_forward.1} parent=1 // pred_check_branch
      %25 = sbr.rel (0) target = $region9
    $region8: #{adv_celebset_thgr_forward.1} parent=1 // pred_region
      _
    $region9: #{adv_celebset_thgr_forward.1} parent=1 // pred_fallthru
      _
    // Predicated region
    $region10: #{adv_celebset_thgr_forward.1} parent=1 // pred_check
      _
    $region11: #{adv_celebset_thgr_forward.1} parent=1 // pred_check_branch
      %27 = sbr.rel (0) target = $region13
    $region12: #{adv_celebset_thgr_forward.1} parent=1 // pred_region
      _
    $region13: #{adv_celebset_thgr_forward.1} parent=1 // pred_fallthru
      _
    // Predicated region
    $region14: #{adv_celebset_thgr_forward.1} parent=1 // pred_check
      _
    $region15: #{adv_celebset_thgr_forward.1} parent=1 // pred_check_branch
      %29 = sbr.rel (0) target = $region17
    $region16: #{adv_celebset_thgr_forward.1} parent=1 // pred_region
      _
    $region17: #{adv_celebset_thgr_forward.1} parent=1 // pred_fallthru
      _
    // Predicated region
    $region18: #{adv_celebset_thgr_forward.1} parent=1 // pred_check
      _
    $region19: #{adv_celebset_thgr_forward.1} parent=1 // pred_check_branch
      %31 = sbr.rel (0) target = $region21
    $region20: #{adv_celebset_thgr_forward.1} parent=1 // pred_region
      _
    $region21: #{adv_celebset_thgr_forward.1} parent=1 // pred_fallthru
      _
    // Predicated region
    $region22: #{adv_celebset_thgr_forward.1} parent=1 // pred_check
      _
    $region23: #{adv_celebset_thgr_forward.1} parent=1 // pred_check_branch
      %33 = sbr.rel (0) target = $region25
    $region24: #{adv_celebset_thgr_forward.1} parent=1 // pred_region
      _
    $region25: #{adv_celebset_thgr_forward.1} parent=1 // pred_fallthru
      _
    // Predicated region
    $region26: #{adv_celebset_thgr_forward.1} parent=1 // pred_check
      _
    $region27: #{adv_celebset_thgr_forward.1} parent=1 // pred_check_branch
      %35 = sbr.rel (0) target = $region29
    $region28: #{adv_celebset_thgr_forward.1} parent=1 // pred_region
      _
    $region29: #{adv_celebset_thgr_forward.1} parent=1 // pred_fallthru
      _
    // Predicated region
    $region30: #{adv_celebset_thgr_forward.1} parent=1 // pred_check
      _
    $region31: #{adv_celebset_thgr_forward.1} parent=1 // pred_check_branch
      %37 = sbr.rel (0) target = $region33
    $region32: #{adv_celebset_thgr_forward.1} parent=1 // pred_region
      _
    $region33: #{adv_celebset_thgr_forward.1} parent=1 // pred_fallthru
      _
    // Predicated region
    $region34: #{adv_celebset_thgr_forward.1} parent=1 // pred_check
      _
    $region35: #{adv_celebset_thgr_forward.1} parent=1 // pred_check_branch
      %39 = sbr.rel (0) target = $region37
    $region36: #{adv_celebset_thgr_forward.1} parent=1 // pred_region
      %41 = dma.done [#allocation4], 16
    $region37: #{adv_celebset_thgr_forward.1} parent=1 // pred_fallthru
      _
    %42 = sfence
    %s43 = sld [smem:[#allocation2]]
    %s44 = sld [smem:[#allocation2 + $0x1]]
    %v45 = vld [vmem:[%s1] sm:$0xf]
    %v46 = vld [vmem:[%s2] sm:$0xf]
    %v47 = vld [vmem:[%s2 + $0x4] sm:$0xf]
    %v48 = vld [vmem:[%s2 + $0x8] sm:$0xf]
    %v49 = vld [vmem:[%s2 + $0xc] sm:$0xf]
    %v50 = vld [vmem:[%s2 + $0x10] sm:$0xf]
    %v51 = vld [vmem:[%s2 + $0x14] sm:$0xf]
    %v52 = vld [vmem:[%s2 + $0x18] sm:$0xf]
    %v53 = vld [vmem:[%s2 + $0x1c] sm:$0xf]
    %v54 = vld [vmem:[%s2 + $0x20] sm:$0xf]
    %v55 = vld [vmem:[%s2 + $0x24] sm:$0xf]
    %v56 = vld [vmem:[%s2 + $0x28] sm:$0xf]
    %v57 = vld [vmem:[%s2 + $0x2c] sm:$0xf]
    %v58 = vld [vmem:[%s2 + $0x30] sm:$0xf]
    %v59 = vld [vmem:[%s2 + $0x34] sm:$0xf]
    %v60 = vld [vmem:[%s2 + $0x38] sm:$0xf]
    %v61 = vld [vmem:[%s2 + $0x3c] sm:$0xf]
    %v62 = vld [vmem:[%s3] sm:$0x1]
    %v64 = vperm.slane %v62, 0
    %v82 = vunpack.c.l.b16 %v46
    %v83 = vunpack.c.l.b16 %v47
    %v84 = vunpack.c.l.b16 %v48
    %v85 = vunpack.c.l.b16 %v49
    %v86 = vunpack.c.l.b16 %v50
    %v87 = vunpack.c.l.b16 %v51
    %v88 = vunpack.c.l.b16 %v52
    %v89 = vunpack.c.l.b16 %v53
    %v90 = vunpack.c.l.b16 %v54
    %v91 = vunpack.c.l.b16 %v55
    %v92 = vunpack.c.l.b16 %v56
    %v93 = vunpack.c.l.b16 %v57
    %v94 = vunpack.c.l.b16 %v58
    %v95 = vunpack.c.l.b16 %v59
    %v96 = vunpack.c.l.b16 %v60
    %v97 = vunpack.c.l.b16 %v61
    %v98 = vpack.c.b16 %v83, %v82
    %v99 = vpack.c.b16 %v85, %v84
    %v100 = vpack.c.b16 %v87, %v86
    %v101 = vpack.c.b16 %v89, %v88
    %v102 = vpack.c.b16 %v91, %v90
    %v103 = vpack.c.b16 %v93, %v92
    %v104 = vpack.c.b16 %v95, %v94
    %v105 = vpack.c.b16 %v97, %v96
    %114 = vmatpush.bf16.msra.mxu0 %v105
    %115 = vmatpush.bf16.msra.mxu0 %v104
    %116 = vmatpush.bf16.msra.mxu0 %v103
    %117 = vmatpush.bf16.msra.mxu0 %v102
    %118 = vmatpush.bf16.msra.mxu0 %v101
    %119 = vmatpush.bf16.msra.mxu0 %v100
    %120 = vmatpush.bf16.msra.mxu0 %v99
    %121 = vmatpush.bf16.msra.mxu0 %v98
    %122 = vmatmul.bf16.gmra.mxu0 %v45
    %v123 = vpop.f32.mrf.mxu0
    %v124 = vadd.f32 %v64, %v123
    %v125 = vpop.f32.mrf.mxu0
    %126 = vdwg.mxu0
    %vm127 = vcmp.gt.f32.partialorder %v124, 0.0
    %v128 = vstv %s43
    %v129 = vmul.f32 %v128, %v124
    %v130 = vsel %vm127, %v124, %v129
    %v131 = vpack.c.bf16 %v130, %v130
    %v132 = vld [vmem:[%s4] sm:$0xf]
    %v133 = vld [vmem:[%s4 + $0x4] sm:$0xf]
    %v134 = vld [vmem:[%s4 + $0x8] sm:$0xf]
    %v135 = vld [vmem:[%s4 + $0xc] sm:$0xf]
    %v136 = vld [vmem:[%s4 + $0x10] sm:$0xf]
    %v137 = vld [vmem:[%s4 + $0x14] sm:$0xf]
    %v138 = vld [vmem:[%s4 + $0x18] sm:$0xf]
    %v139 = vld [vmem:[%s4 + $0x1c] sm:$0xf]
    %v140 = vld [vmem:[%s4 + $0x20] sm:$0xf]
    %v141 = vld [vmem:[%s4 + $0x24] sm:$0xf]
    %v142 = vld [vmem:[%s4 + $0x28] sm:$0xf]
    %v143 = vld [vmem:[%s4 + $0x2c] sm:$0xf]
    %v144 = vld [vmem:[%s4 + $0x30] sm:$0xf]
    %v145 = vld [vmem:[%s4 + $0x34] sm:$0xf]
    %v146 = vld [vmem:[%s4 + $0x38] sm:$0xf]
    %v147 = vld [vmem:[%s4 + $0x3c] sm:$0xf]
    %v148 = vld [vmem:[%s5] sm:$0x1]
    %v150 = vperm.slane %v148, 0
    %v168 = vunpack.c.l.b16 %v132
    %v169 = vunpack.c.l.b16 %v133
    %v170 = vunpack.c.l.b16 %v134
    %v171 = vunpack.c.l.b16 %v135
    %v172 = vunpack.c.l.b16 %v136
    %v173 = vunpack.c.l.b16 %v137
    %v174 = vunpack.c.l.b16 %v138
    %v175 = vunpack.c.l.b16 %v139
    %v176 = vunpack.c.l.b16 %v140
    %v177 = vunpack.c.l.b16 %v141
    %v178 = vunpack.c.l.b16 %v142
    %v179 = vunpack.c.l.b16 %v143
    %v180 = vunpack.c.l.b16 %v144
    %v181 = vunpack.c.l.b16 %v145
    %v182 = vunpack.c.l.b16 %v146
    %v183 = vunpack.c.l.b16 %v147
    %v184 = vpack.c.b16 %v169, %v168
    %v185 = vpack.c.b16 %v171, %v170
    %v186 = vpack.c.b16 %v173, %v172
    %v187 = vpack.c.b16 %v175, %v174
    %v188 = vpack.c.b16 %v177, %v176
    %v189 = vpack.c.b16 %v179, %v178
    %v190 = vpack.c.b16 %v181, %v180
    %v191 = vpack.c.b16 %v183, %v182
    %200 = vmatpush.bf16.msra.mxu0 %v191
    %201 = vmatpush.bf16.msra.mxu0 %v190
    %202 = vmatpush.bf16.msra.mxu0 %v189
    %203 = vmatpush.bf16.msra.mxu0 %v188
    %204 = vmatpush.bf16.msra.mxu0 %v187
    %205 = vmatpush.bf16.msra.mxu0 %v186
    %206 = vmatpush.bf16.msra.mxu0 %v185
    %207 = vmatpush.bf16.msra.mxu0 %v184
    %208 = vmatmul.bf16.gmra.mxu0 %v131
    %v209 = vpop.f32.mrf.mxu0
    %v210 = vadd.f32 %v150, %v209
    %v211 = vpop.f32.mrf.mxu0
    %212 = vdwg.mxu0
    %vm213 = vcmp.gt.f32.partialorder %v210, 0.0
    %v214 = vstv %s44
    %v215 = vmul.f32 %v214, %v210
    %v216 = vsel %vm213, %v210, %v215
    %v217 = vpack.c.bf16 %v216, %v216
    %v218 = vld [vmem:[%s6] sm:$0xf]
    %v219 = vld [vmem:[%s6 + $0x4] sm:$0xf]
    %v220 = vld [vmem:[%s6 + $0x8] sm:$0xf]
    %v221 = vld [vmem:[%s6 + $0xc] sm:$0xf]
    %v222 = vld [vmem:[%s6 + $0x10] sm:$0xf]
    %v223 = vld [vmem:[%s6 + $0x14] sm:$0xf]
    %v224 = vld [vmem:[%s6 + $0x18] sm:$0xf]
    %v225 = vld [vmem:[%s6 + $0x1c] sm:$0xf]
    %v226 = vld [vmem:[%s6 + $0x20] sm:$0xf]
    %v227 = vld [vmem:[%s6 + $0x24] sm:$0xf]
    %v228 = vld [vmem:[%s6 + $0x28] sm:$0xf]
    %v229 = vld [vmem:[%s6 + $0x2c] sm:$0xf]
    %v230 = vld [vmem:[%s6 + $0x30] sm:$0xf]
    %v231 = vld [vmem:[%s6 + $0x34] sm:$0xf]
    %v232 = vld [vmem:[%s6 + $0x38] sm:$0xf]
    %v233 = vld [vmem:[%s6 + $0x3c] sm:$0xf]
    %v234 = vld [vmem:[%s7] sm:$0x1]
    %v236 = vperm.slane %v234, 0
    %v254 = vunpack.c.l.b16 %v218
    %v255 = vunpack.c.l.b16 %v219
    %v256 = vunpack.c.l.b16 %v220
    %v257 = vunpack.c.l.b16 %v221
    %v258 = vunpack.c.l.b16 %v222
    %v259 = vunpack.c.l.b16 %v223
    %v260 = vunpack.c.l.b16 %v224
    %v261 = vunpack.c.l.b16 %v225
    %v262 = vunpack.c.l.b16 %v226
    %v263 = vunpack.c.l.b16 %v227
    %v264 = vunpack.c.l.b16 %v228
    %v265 = vunpack.c.l.b16 %v229
    %v266 = vunpack.c.l.b16 %v230
    %v267 = vunpack.c.l.b16 %v231
    %v268 = vunpack.c.l.b16 %v232
    %v269 = vunpack.c.l.b16 %v233
    %v270 = vpack.c.b16 %v255, %v254
    %v271 = vpack.c.b16 %v257, %v256
    %v272 = vpack.c.b16 %v259, %v258
    %v273 = vpack.c.b16 %v261, %v260
    %v274 = vpack.c.b16 %v263, %v262
    %v275 = vpack.c.b16 %v265, %v264
    %v276 = vpack.c.b16 %v267, %v266
    %v277 = vpack.c.b16 %v269, %v268
    %286 = vmatpush.bf16.msra.mxu0 %v277
    %287 = vmatpush.bf16.msra.mxu0 %v276
    %288 = vmatpush.bf16.msra.mxu0 %v275
    %289 = vmatpush.bf16.msra.mxu0 %v274
    %290 = vmatpush.bf16.msra.mxu0 %v273
    %291 = vmatpush.bf16.msra.mxu0 %v272
    %292 = vmatpush.bf16.msra.mxu0 %v271
    %293 = vmatpush.bf16.msra.mxu0 %v270
    %294 = vmatmul.bf16.gmra.mxu0 %v217
    %v295 = vpop.f32.mrf.mxu0
    %v296 = vadd.f32 %v236, %v295
    %v297 = vpop.f32.mrf.mxu0
    %298 = vdwg.mxu0
    %299 = vst [vmem:[#allocation5] sm:$0xff] %v296
    // Predicated region
    $region38: #{adv_celebset_thgr_forward.1} parent=1 // pred_check
      _
    $region39: #{adv_celebset_thgr_forward.1} parent=1 // pred_check_branch
      %301 = sbr.rel (0) target = $region41
    $region40: #{adv_celebset_thgr_forward.1} parent=1 // pred_region
      %303 = vsyncadd [#allocation3], 0
      %s305 = sshll.u32 [#allocation5], 4
      %s306 = int_to_ptr.vmem [resolvable:$true] %s305
      %s307 = sshll.u32 %s8, 4
      %s308 = int_to_ptr.hbm [resolvable:$true] %s307
      %310 = dma.vmem_to_hbm [thread:$0]  %s306, 128, %s308, [#allocation3]
    $region41: #{adv_celebset_thgr_forward.1} parent=1 // pred_fallthru
      _
    // Predicated region
    $region42: #{adv_celebset_thgr_forward.1} parent=1 // pred_check
      _
    $region43: #{adv_celebset_thgr_forward.1} parent=1 // pred_check_branch
      %312 = sbr.rel (0) target = $region45
    $region44: #{adv_celebset_thgr_forward.1} parent=1 // pred_region
      %314 = dma.done [#allocation3], 128
    $region45: #{adv_celebset_thgr_forward.1} parent=1 // pred_fallthru
      _
    %315 = vsyncpa [#allocation3], 1
    %316 = vsyncpa [#allocation4], 1

</llo_original>
